<compile_context>
chip_gen: v6e
topology: v6e:2x2x1
jax: 0.10.0
libtpu: 0.0.40
codegen_flags: <defaults>
</compile_context>

<pallas_src>
import jax
import jax.numpy as jnp
from jax.experimental import pallas as pl
from jax.experimental.pallas import tpu as pltpu


def _mlp_kernel(x_ref, w_gate_ref, w_up_ref, w_down_ref, o_ref, acc_ref):
    # x_ref:      (tile_seq, hidden)       -- resident across the k axis
    # w_gate_ref: (hidden, tk)             -- gate columns for this k slice
    # w_up_ref:   (hidden, tk)             -- up   columns for this k slice
    # w_down_ref: (tk, hidden)
    # o_ref:      (tile_seq, hidden)       -- same block across the k axis
    # acc_ref:    (tile_seq, hidden) f32 scratch accumulator
    k = pl.program_id(1)

    x = x_ref[...]

    # Partial gate/up projections for this intermediate slice (f32 MXU accum).
    gate = jnp.dot(x, w_gate_ref[...], preferred_element_type=jnp.float32)
    up = jnp.dot(x, w_up_ref[...], preferred_element_type=jnp.float32)

    # SiluAndMul in f32: silu(gate) * up.
    act = (gate * jax.nn.sigmoid(gate)) * up

    # Partial down_proj for this slice.
    partial = jnp.dot(
        act.astype(w_down_ref.dtype),
        w_down_ref[...],
        preferred_element_type=jnp.float32,
    )

    # First k step writes the accumulator directly (no zero-fill round trip).
    @pl.when(k == 0)
    def _():
        acc_ref[...] = partial

    @pl.when(k > 0)
    def _():
        acc_ref[...] += partial

    @pl.when(k == pl.num_programs(1) - 1)
    def _():
        o_ref[...] = acc_ref[...].astype(o_ref.dtype)


def _round_up(v, m):
    return -(-v // m) * m


def _pick_tile(dim, cap, granularity):
    """Largest multiple of `granularity` that divides `dim` and is <= cap."""
    best = None
    t = granularity
    while t <= min(cap, dim):
        if dim % t == 0:
            best = t
        t += granularity
    return best


def _pick_tile_pref(dim, cap, granularities):
    """Try granularities in order of preference (e.g. 256 -> 128 -> 16)."""
    for g in granularities:
        t = _pick_tile(dim, cap, g)
        if t is not None:
            return t
    return None


def _tpu_vmem_info():
    """Returns (vmem_capacity_bytes, multicore_chip, detected)."""
    vmem = 64 << 20          # conservative default (v7x per-TC VMEM)
    detected = False
    multicore = False
    try:
        info = pltpu.get_tpu_info()
        v = getattr(info, "vmem_capacity_bytes", None)
        if v:
            vmem = int(v)
            detected = True
    except Exception:
        pass
    try:
        kind = jax.devices()[0].device_kind.lower()
        if "v7" in kind:
            multicore = True
    except Exception:
        pass
    # v7x exposes 64 MiB per TensorCore and has 2 TCs per chip.
    if detected and vmem <= (64 << 20):
        multicore = True
    return vmem, multicore, detected


def chameleon_mlp(x, w_gate_up, w_down, *, tile_seq=None, tile_inter=None):
    """x: [seq, hidden]; w_gate_up: [hidden, 2*I] ([gate|up]); w_down: [I, hidden]."""
    seq, hidden = x.shape
    intermediate = w_down.shape[0]
    assert w_gate_up.shape == (hidden, 2 * intermediate)
    assert w_down.shape == (intermediate, hidden)

    xb = x.dtype.itemsize
    gb = w_gate_up.dtype.itemsize
    db = w_down.dtype.itemsize

    # ---- per-generation sizing ------------------------------------------
    vmem_capacity, multicore, detected = _tpu_vmem_info()
    large_vmem = detected and vmem_capacity >= (96 << 20)   # v5e / v6e (128 MiB)
    seq_cap = 1024 if large_vmem else 256                    # v7x / unknown: 256
    inter_cap = 1024 if large_vmem else 512
    vmem_budget = min(int(vmem_capacity * 0.85), 110 << 20)

    # ---- intermediate (reduction) axis: pad to a 128 multiple if needed ---
    if intermediate % 128 == 0:
        inter_eff = intermediate
        gate_operand = w_gate_up          # merged weight passed twice, offset
        up_operand = w_gate_up            # index_maps -> no HBM copy
        down_operand = w_down
        merged = True
    else:
        # Zero-padded columns/rows contribute exactly zero to the output.
        inter_eff = _round_up(intermediate, 128)
        padc = inter_eff - intermediate
        gate_operand = jnp.pad(w_gate_up[:, :intermediate], ((0, 0), (0, padc)))
        up_operand = jnp.pad(w_gate_up[:, intermediate:], ((0, 0), (0, padc)))
        down_operand = jnp.pad(w_down, ((0, padc), (0, 0)))
        merged = False

    if (tile_inter is not None and tile_inter % 128 == 0
            and inter_eff % tile_inter == 0):
        tk = tile_inter
    else:
        # Prefer 256-wide tiles (v6e/v7x MXU width); 128 is always available.
        tk = _pick_tile_pref(inter_eff, inter_cap, (256, 128))

    # ---- seq (parallel) axis ----------------------------------------------
    if xb == 1:
        gran_seq = 32
    elif xb == 2:
        gran_seq = 16      # bf16 packs (16, 128) per vreg
    else:
        gran_seq = 8

    if tile_seq is None:
        tile_seq = _pick_tile_pref(seq, seq_cap, (256, 128, gran_seq))
        if tile_seq is None:
            # Ragged seq: pick a well-formed tile and zero-pad the seq axis.
            tile_seq = min(seq_cap, _round_up(min(seq, 256), gran_seq))

    # v7x has 2 TensorCores per chip: make sure the parallel axis has >= 2
    # tiles so both cores get work (per-TC VMEM is the same either way).
    if multicore and _round_up(seq, tile_seq) // tile_seq < 2 and seq > gran_seq:
        tile_seq = max(gran_seq, _round_up(tile_seq // 2, gran_seq))

    # ---- shrink tiles until the VMEM estimate fits the budget --------------
    def vmem_needed(ts, tki):
        per_step = (ts * hidden * xb            # x tile
                    + 2 * hidden * tki * gb     # gate + up tiles
                    + tki * hidden * db         # down tile
                    + ts * hidden * xb)         # out tile
        acc = ts * hidden * 4                   # f32 accumulator scratch
        temps = 4 * ts * tki * 4                # gate/up/act f32 temporaries
        return 2 * per_step + acc + temps + (2 << 20)

    while vmem_needed(tile_seq, tk) > vmem_budget:
        if tk > 128 and tk % 2 == 0 and inter_eff % (tk // 2) == 0:
            tk //= 2                            # shrink weight stream first
        elif tile_seq > gran_seq and tile_seq % 2 == 0:
            tile_seq //= 2
        else:
            break

    nk = inter_eff // tk
    up_block_off = nk if merged else 0          # up columns start at block I//tk

    seq_padded = _round_up(seq, tile_seq)
    x_in = x if seq_padded == seq else jnp.pad(x, ((0, seq_padded - seq), (0, 0)))

    grid = (seq_padded // tile_seq, nk)

    vmem_limit = int(min(max(vmem_needed(tile_seq, tk), 32 << 20),
                         max(vmem_capacity, 64 << 20)))

    # Weights are re-streamed once per seq tile; account for it in the hint.
    n_seq_tiles = grid[0]
    cost = pl.CostEstimate(
        flops=6 * seq * hidden * intermediate,          # 2*S*H*2I + 2*S*I*H
        transcendentals=seq * intermediate,             # sigmoid
        bytes_accessed=(x.size * xb
                        + n_seq_tiles * (w_gate_up.size * gb + w_down.size * db)
                        + seq * hidden * xb),
    )

    out = pl.pallas_call(
        _mlp_kernel,
        out_shape=jax.ShapeDtypeStruct((seq_padded, hidden), x.dtype),
        grid_spec=pltpu.PrefetchScalarGridSpec(
            num_scalar_prefetch=0,
            grid=grid,
            in_specs=[
                pl.BlockSpec((tile_seq, hidden), lambda i, k: (i, 0)),
                pl.BlockSpec((hidden, tk), lambda i, k: (0, k)),
                pl.BlockSpec((hidden, tk), lambda i, k: (0, up_block_off + k)),
                pl.BlockSpec((tk, hidden), lambda i, k: (k, 0)),
            ],
            out_specs=pl.BlockSpec((tile_seq, hidden), lambda i, k: (i, 0)),
            scratch_shapes=[pltpu.VMEM((tile_seq, hidden), jnp.float32)],
        ),
        compiler_params=pltpu.CompilerParams(
            dimension_semantics=("parallel", "arbitrary"),
            vmem_limit_bytes=vmem_limit,
        ),
        cost_estimate=cost,
    )(x_in, gate_operand, up_operand, down_operand)

    return out if seq_padded == seq else out[:seq]


def chameleon_mlp_ref(x, w_gate_up, w_down):
    intermediate = w_down.shape[0]
    gate_up = x @ w_gate_up
    gate, up = gate_up[:, :intermediate], gate_up[:, intermediate:]
    act = jax.nn.silu(gate) * up
    return act @ w_down


if __name__ == "__main__":
    # Small shapes that still exercise both grid axes (2 seq tiles x 2 k tiles).
    seq, hidden, intermediate = 16, 128, 256

    key = jax.random.PRNGKey(0)
    kx, kg, kd = jax.random.split(key, 3)

    x = jax.random.normal(kx, (seq, hidden), dtype=jnp.float32)
    # Deterministic "Linear" weights, pre-transposed to [in, out], [gate|up] order.
    w_gate_up = jax.random.normal(kg, (hidden, 2 * intermediate), dtype=jnp.float32) * 0.02
    w_down = jax.random.normal(kd, (intermediate, hidden), dtype=jnp.float32) * 0.02

    ref = chameleon_mlp_ref(x, w_gate_up, w_down)

    # Explicit tiles: exercise both grid axes (2 seq tiles x 2 k tiles).
    out = jax.block_until_ready(
        chameleon_mlp(x, w_gate_up, w_down, tile_seq=8, tile_inter=128))
    assert out.shape == (seq, hidden)
    assert jnp.allclose(out, ref, atol=1e-4, rtol=5e-3)

    # Auto-tiled path (per-generation tile / VMEM sizing).
    out_auto = jax.block_until_ready(chameleon_mlp(x, w_gate_up, w_down))
    assert out_auto.shape == (seq, hidden)
    assert jnp.allclose(out_auto, ref, atol=1e-4, rtol=5e-3)

    # bf16 path (production dtype): bf16 operands, f32 MXU accumulation + f32 silu.
    xb16 = x.astype(jnp.bfloat16)
    wgb = w_gate_up.astype(jnp.bfloat16)
    wdb = w_down.astype(jnp.bfloat16)
    out_bf16 = jax.block_until_ready(chameleon_mlp(xb16, wgb, wdb))
    ref_bf16 = chameleon_mlp_ref(
        xb16.astype(jnp.float32), wgb.astype(jnp.float32), wdb.astype(jnp.float32))
    assert out_bf16.shape == (seq, hidden)
    assert jnp.allclose(out_bf16.astype(jnp.float32), ref_bf16, atol=5e-3, rtol=5e-2)

    # Ragged path: seq not a nice tile multiple, intermediate not 128-aligned.
    seq2, i2 = 12, 192
    x2 = jax.random.normal(kx, (seq2, hidden), dtype=jnp.float32)
    wg2 = jax.random.normal(kg, (hidden, 2 * i2), dtype=jnp.float32) * 0.02
    wd2 = jax.random.normal(kd, (i2, hidden), dtype=jnp.float32) * 0.02
    out2 = jax.block_until_ready(chameleon_mlp(x2, wg2, wd2))
    ref2 = chameleon_mlp_ref(x2, wg2, wd2)
    assert out2.shape == (seq2, hidden)
    assert jnp.allclose(out2, ref2, atol=1e-4, rtol=5e-3)

    print("KERNEL_OK")
</pallas_src>

<mosaic_0001>
module attributes {stable_mosaic.version = 11 : i64} {
  func.func @_mlp_kernel(%arg0: i32, %arg1: i32, %arg2: memref<8x128xf32, #tpu.memory_space<vmem>>, %arg3: memref<128x128xf32, #tpu.memory_space<vmem>>, %arg4: memref<128x128xf32, #tpu.memory_space<vmem>>, %arg5: memref<128x128xf32, #tpu.memory_space<vmem>>, %arg6: memref<8x128xf32, #tpu.memory_space<vmem>>, %arg7: memref<8x128xf32, #tpu.memory_space<vmem>>) attributes {dimension_semantics = [#tpu.dimension_semantics<parallel>, #tpu.dimension_semantics<arbitrary>], iteration_bounds = array<i64: 2, 2>, scalar_prefetch = 0 : i64, scratch_operands = 1 : i64, tpu.core_type = #tpu.core_type<tc>, window_params = [{transform_indices = @transform_0, window_bounds = array<i64: 8, 128>}, {transform_indices = @transform_1, window_bounds = array<i64: 128, 128>}, {transform_indices = @transform_2, window_bounds = array<i64: 128, 128>}, {transform_indices = @transform_3, window_bounds = array<i64: 128, 128>}, {transform_indices = @transform_4, window_bounds = array<i64: 8, 128>}]} {
    %c0 = arith.constant 0 : index
    %c0_0 = arith.constant 0 : index
    %0 = vector.load %arg2[%c0, %c0_0] : memref<8x128xf32, #tpu.memory_space<vmem>>, vector<8x128xf32>
    %c0_1 = arith.constant 0 : index
    %c0_2 = arith.constant 0 : index
    %1 = vector.load %arg3[%c0_1, %c0_2] : memref<128x128xf32, #tpu.memory_space<vmem>>, vector<128x128xf32>
    %cst = arith.constant dense<0.000000e+00> : vector<8x128xf32>
    %2 = tpu.matmul %0, %1, %cst {dimension_numbers = #tpu.dot_dimension_numbers<[1], [0], [0], [1], [0, 0, 1, 1], [], []>} : vector<8x128xf32>, vector<128x128xf32>, vector<8x128xf32> -> vector<8x128xf32>
    %c0_3 = arith.constant 0 : index
    %c0_4 = arith.constant 0 : index
    %3 = vector.load %arg4[%c0_3, %c0_4] : memref<128x128xf32, #tpu.memory_space<vmem>>, vector<128x128xf32>
    %cst_5 = arith.constant dense<0.000000e+00> : vector<8x128xf32>
    %4 = tpu.matmul %0, %3, %cst_5 {dimension_numbers = #tpu.dot_dimension_numbers<[1], [0], [0], [1], [0, 0, 1, 1], [], []>} : vector<8x128xf32>, vector<128x128xf32>, vector<8x128xf32> -> vector<8x128xf32>
    %5 = arith.negf %2 : vector<8x128xf32>
    %6 = math.exp %5 : vector<8x128xf32>
    %cst_6 = arith.constant 1.000000e+00 : f32
    %7 = vector.broadcast %cst_6 : f32 to vector<8x128xf32>
    %8 = arith.addf %7, %6 : vector<8x128xf32>
    %9 = arith.divf %7, %8 : vector<8x128xf32>
    %10 = arith.mulf %2, %9 : vector<8x128xf32>
    %11 = arith.mulf %10, %4 : vector<8x128xf32>
    %c0_7 = arith.constant 0 : index
    %c0_8 = arith.constant 0 : index
    %12 = vector.load %arg5[%c0_7, %c0_8] : memref<128x128xf32, #tpu.memory_space<vmem>>, vector<128x128xf32>
    %cst_9 = arith.constant dense<0.000000e+00> : vector<8x128xf32>
    %13 = tpu.matmul %11, %12, %cst_9 {dimension_numbers = #tpu.dot_dimension_numbers<[1], [0], [0], [1], [0, 0, 1, 1], [], []>} : vector<8x128xf32>, vector<128x128xf32>, vector<8x128xf32> -> vector<8x128xf32>
    %c0_i32 = arith.constant 0 : i32
    %14 = arith.cmpi eq, %arg1, %c0_i32 : i32
    %15 = arith.extui %14 : i1 to i32
    %c0_i32_10 = arith.constant 0 : i32
    %16 = arith.cmpi ne, %15, %c0_i32_10 : i32
    scf.if %16 {
      %c0_14 = arith.constant 0 : index
      %c0_15 = arith.constant 0 : index
      %23 = vector.load %arg7[%c0_14, %c0_15] : memref<8x128xf32, #tpu.memory_space<vmem>>, vector<8x128xf32>
      tpu.vector_store %arg7[%c0_14, %c0_15], %13 {strides = array<i32>} : memref<8x128xf32, #tpu.memory_space<vmem>>, vector<8x128xf32>,
    } else {
    }
    %c0_i32_11 = arith.constant 0 : i32
    %17 = arith.cmpi sgt, %arg1, %c0_i32_11 : i32
    %18 = arith.extui %17 : i1 to i32
    %c0_i32_12 = arith.constant 0 : i32
    %19 = arith.cmpi ne, %18, %c0_i32_12 : i32
    scf.if %19 {
      %c0_14 = arith.constant 0 : index
      %c0_15 = arith.constant 0 : index
      %23 = vector.load %arg7[%c0_14, %c0_15] : memref<8x128xf32, #tpu.memory_space<vmem>>, vector<8x128xf32>
      %24 = arith.addf %23, %13 : vector<8x128xf32>
      %c0_16 = arith.constant 0 : index
      %c0_17 = arith.constant 0 : index
      %25 = vector.load %arg7[%c0_16, %c0_17] : memref<8x128xf32, #tpu.memory_space<vmem>>, vector<8x128xf32>
      tpu.vector_store %arg7[%c0_16, %c0_17], %24 {strides = array<i32>} : memref<8x128xf32, #tpu.memory_space<vmem>>, vector<8x128xf32>,
    } else {
    }
    %c1_i32 = arith.constant 1 : i32
    %20 = arith.cmpi eq, %arg1, %c1_i32 : i32
    %21 = arith.extui %20 : i1 to i32
    %c0_i32_13 = arith.constant 0 : i32
    %22 = arith.cmpi ne, %21, %c0_i32_13 : i32
    scf.if %22 {
      %c0_14 = arith.constant 0 : index
      %c0_15 = arith.constant 0 : index
      %23 = vector.load %arg7[%c0_14, %c0_15] : memref<8x128xf32, #tpu.memory_space<vmem>>, vector<8x128xf32>
      %c0_16 = arith.constant 0 : index
      %c0_17 = arith.constant 0 : index
      %24 = vector.load %arg6[%c0_16, %c0_17] : memref<8x128xf32, #tpu.memory_space<vmem>>, vector<8x128xf32>
      tpu.vector_store %arg6[%c0_16, %c0_17], %23 {strides = array<i32>} : memref<8x128xf32, #tpu.memory_space<vmem>>, vector<8x128xf32>,
    } else {
    }
    return
  }
  func.func @transform_0(%arg0: i32, %arg1: i32) -> (i32, i32) {
    %c0_i32 = arith.constant 0 : i32
    %c0_i32_0 = arith.constant 0 : i32
    return %arg0, %c0_i32 : i32, i32
  }
  func.func @transform_1(%arg0: i32, %arg1: i32) -> (i32, i32) {
    %c0_i32 = arith.constant 0 : i32
    %c0_i32_0 = arith.constant 0 : i32
    return %c0_i32, %arg1 : i32, i32
  }
  func.func @transform_2(%arg0: i32, %arg1: i32) -> (i32, i32) {
    %c2_i32 = arith.constant 2 : i32
    %0 = arith.addi %c2_i32, %arg1 : i32
    %c0_i32 = arith.constant 0 : i32
    %c0_i32_0 = arith.constant 0 : i32
    return %c0_i32, %0 : i32, i32
  }
  func.func @transform_3(%arg0: i32, %arg1: i32) -> (i32, i32) {
    %c0_i32 = arith.constant 0 : i32
    %c0_i32_0 = arith.constant 0 : i32
    return %arg1, %c0_i32 : i32, i32
  }
  func.func @transform_4(%arg0: i32, %arg1: i32) -> (i32, i32) {
    %c0_i32 = arith.constant 0 : i32
    %c0_i32_0 = arith.constant 0 : i32
    return %arg0, %c0_i32 : i32, i32
  }
}

</mosaic_0001>

<llo_original>
// kernel: tpu_custom_call.1
$region0: #{tpu_custom_call.1}
  #allocation0 [shape = 'u32[]', space=smem, size = 0x4, offset = 0x4, fixed_abs, tag = 'smem constant byte address 0x4 - core index']
  #allocation1 [shape = 'u32[144,128]{1,0:T(1,128)}', space=vmem, size = 0x12000, scoped, tag = 'internal scratch']
  #allocation2 [shape = 'f32[8,128]{1,0:T(8,128)}', space=vmem, size = 0x1000, scoped, tag = 'scratch operand']
  %s0 = inlined_call_operand.hbm [shape: f32[16,128], index: 0, kind: input, shape index: {}]
  %s1 = inlined_call_operand.hbm [shape: f32[128,512], index: 1, kind: input, shape index: {}]
  %s2 = inlined_call_operand.hbm [shape: f32[128,512], index: 2, kind: input, shape index: {}]
  %s3 = inlined_call_operand.hbm [shape: f32[256,128], index: 3, kind: input, shape index: {}]
  %s4 = inlined_call_operand.hbm [shape: f32[16,128], index: 4, kind: output, shape index: {}]
  %s5 = sld [smem:[#allocation0]]
  $region77: #{tpu_custom_call.1} parent=0
    _
  %s7 = ssub.s32 1, %s5
  %s8 = scalar_select 0, %s7, %s5
  $region1: #{tpu_custom_call.1} parent=0
    #allocation3 [shape = 'u8[8192]{0}', space=vmem, size = 0x2000, scoped, tag = 'input window, operand 0']
    #allocation4 [shape = 's32[2]{0}', space=sflag, size = 0x8, scoped, tag = 'scoped memory for tpu_custom_call.1']
    #allocation5 [shape = 's32[2]{0}', space=sflag, size = 0x8, scoped, tag = 'scoped memory for tpu_custom_call.1']
    #allocation6 [shape = 'u8[131072]{0}', space=vmem, size = 0x20000, scoped, tag = 'input window, operand 1']
    #allocation7 [shape = 's32[2]{0}', space=sflag, size = 0x8, scoped, tag = 'scoped memory for tpu_custom_call.1']
    #allocation8 [shape = 'u8[131072]{0}', space=vmem, size = 0x20000, scoped, tag = 'input window, operand 2']
    #allocation9 [shape = 'u8[131072]{0}', space=vmem, size = 0x20000, scoped, tag = 'input window, operand 3']
    #allocation10 [shape = 's32[2]{0}', space=sflag, size = 0x8, scoped, tag = 'scoped memory for tpu_custom_call.1']
    #allocation11 [shape = 'u8[8192]{0}', space=vmem, size = 0x2000, scoped, tag = 'output window, operand 0']
    %9 = vsyncpa [#allocation4], 0
    %s10 = scalar_lea.sflag [#allocation4], 1
    %11 = vsyncpa %s10, 0
    %12 = vsyncpa [#allocation7], 0
    %s13 = scalar_lea.sflag [#allocation7], 1
    %14 = vsyncpa %s13, 0
    %15 = vsyncpa [#allocation10], 0
    %s16 = scalar_lea.sflag [#allocation10], 1
    %17 = vsyncpa %s16, 0
    %18 = vsyncpa [#allocation5], 0
    %s19 = scalar_lea.sflag [#allocation5], 1
    %20 = vsyncpa %s19, 0
    loop: start=0, step=1, limit=6
    $region2: #{tpu_custom_call.1} parent=1 // loop_pre_header
      _
    $region3: #{tpu_custom_call.1} parent=1 // loop_header
      %s22 = sphi 0, %s26
      %p23 = scmp.ge.s32.totalorder %s22, 6
      %s29 = sphi 0, %s41
      %s30 = sphi 0, %s37
      %s31 = sphi 0, %s29
      %s32 = sphi 0, %s30
      %s33 = sphi 0, %s31
      %s34 = sphi 0, %s32
      %s44 = sphi 0, %s46
      %s47 = sphi 0, %s44
      %s48 = sphi 0, %s47
      %s64 = sphi 0, %s48
      %s70 = sphi 0, %s72
      %s73 = sphi 0, %s70
      %s74 = sphi 0, %s73
      %s90 = sphi 0, %s74
      %s98 = sphi 0, %s100
      %s101 = sphi 0, %s98
      %s102 = sphi 0, %s101
      %s118 = sphi 0, %s102
      %s124 = sphi 0, %s126
      %s127 = sphi 0, %s124
      %s128 = sphi 0, %s127
      %s144 = sphi 0, %s128
      %s150 = sphi 0, %s152
      %s153 = sphi 0, %s150
      %s154 = sphi 0, %s153
      %s170 = sphi 0, %s154
    $region4: #{tpu_custom_call.1} parent=1 // loop_header_branch
      %25 = sbr.rel (%p23) target = $region8
    $region5: #{tpu_custom_call.1} parent=1 // loop_body
      %s27 = ssub.s32 %s22, 1
      %s28 = ssub.s32 %s22, 2
      %s35 = sadd.s32 1, %s30
      %p36 = scmp.ge.s32.totalorder %s35, 2
      %s37 = scalar_select %p36, 0, %s35
      %s38 = sadd.s32 1, %s29
      %s39 = scalar_select %p36, %s38, %s29
      %p40 = scmp.ge.s32.totalorder %s39, 2
      %s41 = scalar_select %p40, 0, %s39
      %s42 = ssub.s32 %s29, %s41
      %p43 = scmp.eq.s32.totalorder %s42, 0
      %s45 = sadd.s32 %s44, 1
      %s46 = scalar_select %p43, %s44, %s45
      %p49 = pneg %p43
      %p50 = scmp.eq.s32.totalorder %s22, 3
      %p51 = por %p49, %p50
      %p52 = scmp.ne.s32.totalorder %s44, %s47
      %p53 = scmp.eq.s32.totalorder %s22, 0
      %p54 = por %p52, %p53
      %p55 = scmp.ne.s32.totalorder %s44, %s47
      %p56 = scmp.eq.s32.totalorder %s27, 3
      %p57 = por %p55, %p56
      %p58 = scmp.ne.s32.totalorder %s47, %s48
      %p59 = scmp.eq.s32.totalorder %s27, 0
      %p60 = por %p58, %p59
      %p61 = scmp.ne.s32.totalorder %s47, %s48
      %p62 = scmp.eq.s32.totalorder %s28, 3
      %p63 = por %p61, %p62
      %p65 = scmp.ne.s32.totalorder %s48, %s64
      %p66 = scmp.eq.s32.totalorder %s28, 0
      %p67 = por %p65, %p66
      %s68 = ssub.s32 %s30, %s37
      %p69 = scmp.eq.s32.totalorder %s68, 0
      %s71 = sadd.s32 %s70, 1
      %s72 = scalar_select %p69, %s70, %s71
      %p75 = pneg %p69
      %p76 = scmp.eq.s32.totalorder %s22, 3
      %p77 = por %p75, %p76
      %p78 = scmp.ne.s32.totalorder %s70, %s73
      %p79 = scmp.eq.s32.totalorder %s22, 0
      %p80 = por %p78, %p79
      %p81 = scmp.ne.s32.totalorder %s70, %s73
      %p82 = scmp.eq.s32.totalorder %s27, 3
      %p83 = por %p81, %p82
      %p84 = scmp.ne.s32.totalorder %s73, %s74
      %p85 = scmp.eq.s32.totalorder %s27, 0
      %p86 = por %p84, %p85
      %p87 = scmp.ne.s32.totalorder %s73, %s74
      %p88 = scmp.eq.s32.totalorder %s28, 3
      %p89 = por %p87, %p88
      %p91 = scmp.ne.s32.totalorder %s74, %s90
      %p92 = scmp.eq.s32.totalorder %s28, 0
      %p93 = por %p91, %p92
      %s94 = sadd.s32 %s30, 2
      %s95 = sadd.s32 %s37, 2
      %s96 = ssub.s32 %s94, %s95
      %p97 = scmp.eq.s32.totalorder %s96, 0
      %s99 = sadd.s32 %s98, 1
      %s100 = scalar_select %p97, %s98, %s99
      %p103 = pneg %p97
      %p104 = scmp.eq.s32.totalorder %s22, 3
      %p105 = por %p103, %p104
      %p106 = scmp.ne.s32.totalorder %s98, %s101
      %p107 = scmp.eq.s32.totalorder %s22, 0
      %p108 = por %p106, %p107
      %p109 = scmp.ne.s32.totalorder %s98, %s101
      %p110 = scmp.eq.s32.totalorder %s27, 3
      %p111 = por %p109, %p110
      %p112 = scmp.ne.s32.totalorder %s101, %s102
      %p113 = scmp.eq.s32.totalorder %s27, 0
      %p114 = por %p112, %p113
      %p115 = scmp.ne.s32.totalorder %s101, %s102
      %p116 = scmp.eq.s32.totalorder %s28, 3
      %p117 = por %p115, %p116
      %p119 = scmp.ne.s32.totalorder %s102, %s118
      %p120 = scmp.eq.s32.totalorder %s28, 0
      %p121 = por %p119, %p120
      %s122 = ssub.s32 %s30, %s37
      %p123 = scmp.eq.s32.totalorder %s122, 0
      %s125 = sadd.s32 %s124, 1
      %s126 = scalar_select %p123, %s124, %s125
      %p129 = pneg %p123
      %p130 = scmp.eq.s32.totalorder %s22, 3
      %p131 = por %p129, %p130
      %p132 = scmp.ne.s32.totalorder %s124, %s127
      %p133 = scmp.eq.s32.totalorder %s22, 0
      %p134 = por %p132, %p133
      %p135 = scmp.ne.s32.totalorder %s124, %s127
      %p136 = scmp.eq.s32.totalorder %s27, 3
      %p137 = por %p135, %p136
      %p138 = scmp.ne.s32.totalorder %s127, %s128
      %p139 = scmp.eq.s32.totalorder %s27, 0
      %p140 = por %p138, %p139
      %p141 = scmp.ne.s32.totalorder %s127, %s128
      %p142 = scmp.eq.s32.totalorder %s28, 3
      %p143 = por %p141, %p142
      %p145 = scmp.ne.s32.totalorder %s128, %s144
      %p146 = scmp.eq.s32.totalorder %s28, 0
      %p147 = por %p145, %p146
      %s148 = ssub.s32 %s29, %s41
      %p149 = scmp.eq.s32.totalorder %s148, 0
      %s151 = sadd.s32 %s150, 1
      %s152 = scalar_select %p149, %s150, %s151
      %p155 = pneg %p149
      %p156 = scmp.eq.s32.totalorder %s22, 3
      %p157 = por %p155, %p156
      %p158 = scmp.ne.s32.totalorder %s150, %s153
      %p159 = scmp.eq.s32.totalorder %s22, 0
      %p160 = por %p158, %p159
      %p161 = scmp.ne.s32.totalorder %s150, %s153
      %p162 = scmp.eq.s32.totalorder %s27, 3
      %p163 = por %p161, %p162
      %p164 = scmp.ne.s32.totalorder %s153, %s154
      %p165 = scmp.eq.s32.totalorder %s27, 0
      %p166 = por %p164, %p165
      %p167 = scmp.ne.s32.totalorder %s153, %s154
      %p168 = scmp.eq.s32.totalorder %s28, 3
      %p169 = por %p167, %p168
      %p171 = scmp.ne.s32.totalorder %s154, %s170
      %p172 = scmp.eq.s32.totalorder %s28, 0
      %p173 = por %p171, %p172
      %p174 = scmp.le.s32.totalorder 1, %s22
      %p175 = scmp.lt.s32.totalorder %s22, 5
      %p176 = pnand %p174, %p175
      %p177 = pneg %p176
      // Predicated region
      $region9: #{tpu_custom_call.1} parent=5 // pred_check
        _
      $region10: #{tpu_custom_call.1} parent=5 // pred_check_branch
        %179 = sbr.rel (%p176) target = $region12
      $region11: #{tpu_custom_call.1} parent=5 // pred_region
        %s180 = ssub.s32 %s22, 1
      $region12: #{tpu_custom_call.1} parent=5 // pred_fallthru
        _
      %p181 = scmp.lt.s32.totalorder %s22, 4
      // Predicated region
      $region13: #{tpu_custom_call.1} parent=5 // pred_check
        %p182 = pneg %p181
      $region14: #{tpu_custom_call.1} parent=5 // pred_check_branch
        %184 = sbr.rel (%p182) target = $region16
      $region15: #{tpu_custom_call.1} parent=5 // pred_region
        // Predicated region
        $region17: #{tpu_custom_call.1} parent=15 // pred_check
          %p185 = pneg %p54
        $region18: #{tpu_custom_call.1} parent=15 // pred_check_branch
          %187 = sbr.rel (%p185) target = $region20
        $region19: #{tpu_custom_call.1} parent=15 // pred_region
          %s188 = sand.u32 %s44, 1
          %s189 = scalar_lea.sflag [#allocation4], %s188
          %s190 = sand.u32 %s44, 1
          %s191 = smul.addr %s190, 8
          %s192 = scalar_lea.vmem [#allocation3], %s191
          %s194 = ssub.s32 128, 128
          %195 = vsyncadd %s189, %s194
          %s196 = smul.addr %s29, 128
          %s197 = scalar_lea.hbm %s0, %s196
          %s199 = sshll.u32 %s192, 4
          %s200 = int_to_ptr.vmem [resolvable:$true] %s199
          %202 = dma.hbm_to_vmem [thread:$0]  %s197, 128, %s200, %s189
        $region20: #{tpu_custom_call.1} parent=15 // pred_fallthru
          _
        // Predicated region
        $region21: #{tpu_custom_call.1} parent=15 // pred_check
          %p203 = pneg %p80
        $region22: #{tpu_custom_call.1} parent=15 // pred_check_branch
          %205 = sbr.rel (%p203) target = $region24
        $region23: #{tpu_custom_call.1} parent=15 // pred_region
          %s206 = sand.u32 %s22, 1
          %s207 = scalar_lea.sflag [#allocation7], %s206
          %s208 = sand.u32 %s70, 1
          %s209 = smul.addr %s208, 128
          %s210 = scalar_lea.vmem [#allocation6], %s209
          %s212 = ssub.s32 2048, 2048
          %213 = vsyncadd %s207, %s212
          %s214 = smul.addr %s30, 128
          %s215 = scalar_lea.hbm %s1, %s214
          %s216 = sshll.u32 %s210, 4
          %s217 = int_to_ptr.vmem [resolvable:$true] %s216
          %222 = dma.hbm_to_vmem [thread:$0]  %s215, 2048, %s217, %s207, 512, 128, 8
        $region24: #{tpu_custom_call.1} parent=15 // pred_fallthru
          _
        // Predicated region
        $region25: #{tpu_custom_call.1} parent=15 // pred_check
          %p223 = pneg %p108
        $region26: #{tpu_custom_call.1} parent=15 // pred_check_branch
          %225 = sbr.rel (%p223) target = $region28
        $region27: #{tpu_custom_call.1} parent=15 // pred_region
          %s226 = sand.u32 %s22, 1
          %s227 = scalar_lea.sflag [#allocation7], %s226
          %s228 = sand.u32 %s98, 1
          %s229 = smul.addr %s228, 128
          %s230 = scalar_lea.vmem [#allocation8], %s229
          %s231 = sadd.s32 %s30, 2
          %s233 = ssub.s32 2048, 2048
          %234 = vsyncadd %s227, %s233
          %s235 = smul.addr %s231, 128
          %s236 = scalar_lea.hbm %s2, %s235
          %s237 = sshll.u32 %s230, 4
          %s238 = int_to_ptr.vmem [resolvable:$true] %s237
          %243 = dma.hbm_to_vmem [thread:$0]  %s236, 2048, %s238, %s227, 512, 128, 8
        $region28: #{tpu_custom_call.1} parent=15 // pred_fallthru
          _
        // Predicated region
        $region29: #{tpu_custom_call.1} parent=15 // pred_check
          %p244 = pneg %p134
        $region30: #{tpu_custom_call.1} parent=15 // pred_check_branch
          %246 = sbr.rel (%p244) target = $region32
        $region31: #{tpu_custom_call.1} parent=15 // pred_region
          %s247 = sand.u32 %s124, 1
          %s248 = scalar_lea.sflag [#allocation10], %s247
          %s249 = sand.u32 %s124, 1
          %s250 = smul.addr %s249, 128
          %s251 = scalar_lea.vmem [#allocation9], %s250
          %s252 = smul.u32 16, %s30
          %s254 = ssub.s32 2048, 2048
          %255 = vsyncadd %s248, %s254
          %s256 = smul.addr %s252, 128
          %s257 = scalar_lea.hbm %s3, %s256
          %s258 = sshll.u32 %s251, 4
          %s259 = int_to_ptr.vmem [resolvable:$true] %s258
          %264 = dma.hbm_to_vmem [thread:$0]  %s257, 2048, %s259, %s248, 128, 128, 8
        $region32: #{tpu_custom_call.1} parent=15 // pred_fallthru
          _
      $region16: #{tpu_custom_call.1} parent=5 // pred_fallthru
        _
      %p265 = scmp.le.s32.totalorder 1, %s22
      %p266 = scmp.lt.s32.totalorder %s22, 5
      %p267 = pnand %p265, %p266
      %p268 = pneg %p267
      // Predicated region
      $region33: #{tpu_custom_call.1} parent=5 // pred_check
        _
      $region34: #{tpu_custom_call.1} parent=5 // pred_check_branch
        %270 = sbr.rel (%p267) target = $region36
      $region35: #{tpu_custom_call.1} parent=5 // pred_region
        %s271 = ssub.s32 %s22, 1
        %s272 = sand.u32 %s47, 1
        %s273 = scalar_lea.sflag [#allocation4], %s272
        %s274 = sand.u32 %s47, 1
        %s275 = smul.addr %s274, 8
        %s276 = scalar_lea.vmem [#allocation3], %s275
        // Predicated region
        $region37: #{tpu_custom_call.1} parent=35 // pred_check
          %p277 = pneg %p60
        $region38: #{tpu_custom_call.1} parent=35 // pred_check_branch
          %279 = sbr.rel (%p277) target = $region40
        $region39: #{tpu_custom_call.1} parent=35 // pred_region
          %280 = dma.done %s273, 128
        $region40: #{tpu_custom_call.1} parent=35 // pred_fallthru
          _
        %s281 = sand.u32 %s27, 1
        %s282 = scalar_lea.sflag [#allocation7], %s281
        %s283 = sand.u32 %s73, 1
        %s284 = smul.addr %s283, 128
        %s285 = scalar_lea.vmem [#allocation6], %s284
        // Predicated region
        $region41: #{tpu_custom_call.1} parent=35 // pred_check
          %p286 = pneg %p86
        $region42: #{tpu_custom_call.1} parent=35 // pred_check_branch
          %288 = sbr.rel (%p286) target = $region44
        $region43: #{tpu_custom_call.1} parent=35 // pred_region
          %289 = dma.done %s282, 2048
        $region44: #{tpu_custom_call.1} parent=35 // pred_fallthru
          _
        %s290 = sand.u32 %s27, 1
        %s291 = scalar_lea.sflag [#allocation7], %s290
        %s292 = sand.u32 %s101, 1
        %s293 = smul.addr %s292, 128
        %s294 = scalar_lea.vmem [#allocation8], %s293
        // Predicated region
        $region45: #{tpu_custom_call.1} parent=35 // pred_check
          %p295 = pneg %p114
        $region46: #{tpu_custom_call.1} parent=35 // pred_check_branch
          %297 = sbr.rel (%p295) target = $region48
        $region47: #{tpu_custom_call.1} parent=35 // pred_region
          %298 = dma.done %s291, 2048
        $region48: #{tpu_custom_call.1} parent=35 // pred_fallthru
          _
        %s299 = sand.u32 %s127, 1
        %s300 = scalar_lea.sflag [#allocation10], %s299
        %s301 = sand.u32 %s127, 1
        %s302 = smul.addr %s301, 128
        %s303 = scalar_lea.vmem [#allocation9], %s302
        // Predicated region
        $region49: #{tpu_custom_call.1} parent=35 // pred_check
          %p304 = pneg %p140
        $region50: #{tpu_custom_call.1} parent=35 // pred_check_branch
          %306 = sbr.rel (%p304) target = $region52
        $region51: #{tpu_custom_call.1} parent=35 // pred_region
          %307 = dma.done %s300, 2048
        $region52: #{tpu_custom_call.1} parent=35 // pred_fallthru
          _
        %s308 = sand.u32 %s47, 1
        %s309 = scalar_lea.sflag [#allocation4], %s308
        %s310 = sand.u32 %s47, 1
        %s311 = smul.addr %s310, 8
        %s312 = scalar_lea.vmem [#allocation3], %s311
        %p313 = pneg %p60
        %p314 = pneg %p57
        %s315 = sand.u32 %s27, 1
        %s316 = scalar_lea.sflag [#allocation7], %s315
        %s317 = sand.u32 %s73, 1
        %s318 = smul.addr %s317, 128
        %s319 = scalar_lea.vmem [#allocation6], %s318
        %p320 = pneg %p86
        %p321 = pneg %p83
        %s322 = sand.u32 %s27, 1
        %s323 = scalar_lea.sflag [#allocation7], %s322
        %s324 = sand.u32 %s101, 1
        %s325 = smul.addr %s324, 128
        %s326 = scalar_lea.vmem [#allocation8], %s325
        %p327 = pneg %p114
        %p328 = pneg %p111
        %s329 = sand.u32 %s127, 1
        %s330 = scalar_lea.sflag [#allocation10], %s329
        %s331 = sand.u32 %s127, 1
        %s332 = smul.addr %s331, 128
        %s333 = scalar_lea.vmem [#allocation9], %s332
        %p334 = pneg %p140
        %p335 = pneg %p137
        %p336 = pneg %p166
        %p337 = pneg %p163
        %s338 = sand.u32 %s153, 1
        %s339 = scalar_lea.sflag [#allocation5], %s338
        %s340 = sand.u32 %s153, 1
        %s341 = smul.addr %s340, 8
        %s342 = scalar_lea.vmem [#allocation11], %s341
        %s343 = sadd.s32 %s32, 2
        %s344 = smul.u32 16, %s32
        %v345 = vld [vmem:[%s276] sm:$0xff]
        %v346 = vld [vmem:[%s285] sm:$0xff]
        %v347 = vld [vmem:[%s285 + $0x8] sm:$0xff]
        %v348 = vld [vmem:[%s285 + $0x10] sm:$0xff]
        %v349 = vld [vmem:[%s285 + $0x18] sm:$0xff]
        %v350 = vld [vmem:[%s285 + $0x20] sm:$0xff]
        %v351 = vld [vmem:[%s285 + $0x28] sm:$0xff]
        %v352 = vld [vmem:[%s285 + $0x30] sm:$0xff]
        %v353 = vld [vmem:[%s285 + $0x38] sm:$0xff]
        %v354 = vld [vmem:[%s285 + $0x40] sm:$0xff]
        %v355 = vld [vmem:[%s285 + $0x48] sm:$0xff]
        %v356 = vld [vmem:[%s285 + $0x50] sm:$0xff]
        %v357 = vld [vmem:[%s285 + $0x58] sm:$0xff]
        %v358 = vld [vmem:[%s285 + $0x60] sm:$0xff]
        %v359 = vld [vmem:[%s285 + $0x68] sm:$0xff]
        %v360 = vld [vmem:[%s285 + $0x70] sm:$0xff]
        %v361 = vld [vmem:[%s285 + $0x78] sm:$0xff]
        %362 = vmatprep.subr.mxu0 0.0
        %363 = vmatpush1.msra.mxu0 %v361
        %364 = vmatprep.subr.mxu0 0.0
        %365 = vmatpush1.msra.mxu0 %v360
        %366 = vmatprep.subr.mxu0 0.0
        %367 = vmatpush1.msra.mxu0 %v359
        %368 = vmatprep.subr.mxu0 0.0
        %369 = vmatpush1.msra.mxu0 %v358
        %370 = vmatprep.subr.mxu0 0.0
        %371 = vmatpush1.msra.mxu0 %v357
        %372 = vmatprep.subr.mxu0 0.0
        %373 = vmatpush1.msra.mxu0 %v356
        %374 = vmatprep.subr.mxu0 0.0
        %375 = vmatpush1.msra.mxu0 %v355
        %376 = vmatprep.subr.mxu0 0.0
        %377 = vmatpush1.msra.mxu0 %v354
        %378 = vmatprep.subr.mxu0 0.0
        %379 = vmatpush1.msra.mxu0 %v353
        %380 = vmatprep.subr.mxu0 0.0
        %381 = vmatpush1.msra.mxu0 %v352
        %382 = vmatprep.subr.mxu0 0.0
        %383 = vmatpush1.msra.mxu0 %v351
        %384 = vmatprep.subr.mxu0 0.0
        %385 = vmatpush1.msra.mxu0 %v350
        %386 = vmatprep.subr.mxu0 0.0
        %387 = vmatpush1.msra.mxu0 %v349
        %388 = vmatprep.subr.mxu0 0.0
        %389 = vmatpush1.msra.mxu0 %v348
        %390 = vmatprep.subr.mxu0 0.0
        %391 = vmatpush1.msra.mxu0 %v347
        %392 = vmatprep.subr.mxu0 0.0
        %393 = vmatpush1.msra.mxu0 %v346
        %394 = vmatprep.subr.mxu0 0.0
        %395 = vmatpush2.msra.mxu0 0.0
        %396 = vmatprep.subr.mxu0 0.0
        %397 = vmatpush2.msra.mxu0 0.0
        %398 = vmatprep.subr.mxu0 0.0
        %399 = vmatpush2.msra.mxu0 0.0
        %400 = vmatprep.subr.mxu0 0.0
        %401 = vmatpush2.msra.mxu0 0.0
        %402 = vmatprep.subr.mxu0 0.0
        %403 = vmatpush2.msra.mxu0 0.0
        %404 = vmatprep.subr.mxu0 0.0
        %405 = vmatpush2.msra.mxu0 0.0
        %406 = vmatprep.subr.mxu0 0.0
        %407 = vmatpush2.msra.mxu0 0.0
        %408 = vmatprep.subr.mxu0 0.0
        %409 = vmatpush2.msra.mxu0 0.0
        %410 = vmatprep.subr.mxu0 0.0
        %411 = vmatpush2.msra.mxu0 0.0
        %412 = vmatprep.subr.mxu0 0.0
        %413 = vmatpush2.msra.mxu0 0.0
        %414 = vmatprep.subr.mxu0 0.0
        %415 = vmatpush2.msra.mxu0 0.0
        %416 = vmatprep.subr.mxu0 0.0
        %417 = vmatpush2.msra.mxu0 0.0
        %418 = vmatprep.subr.mxu0 0.0
        %419 = vmatpush2.msra.mxu0 0.0
        %420 = vmatprep.subr.mxu0 0.0
        %421 = vmatpush2.msra.mxu0 0.0
        %422 = vmatprep.subr.mxu0 0.0
        %423 = vmatpush2.msra.mxu0 0.0
        %424 = vmatprep.subr.mxu0 0.0
        %425 = vmatpush2.msra.mxu0 0.0
        %426 = vmatprep.mubr.f32.mxu0 0.0
        %427 = vmatmul.mubr.f32.gmra.mxu0 %v345
        %v428 = vpop.f32.mrf.mxu0
        %v429 = vadd.f32 0.0, %v428
        %v430 = vpop.f32.mrf.mxu0
        %431 = vdwg.mxu0
        %v432 = vld [vmem:[%s294] sm:$0xff]
        %v433 = vld [vmem:[%s294 + $0x8] sm:$0xff]
        %v434 = vld [vmem:[%s294 + $0x10] sm:$0xff]
        %v435 = vld [vmem:[%s294 + $0x18] sm:$0xff]
        %v436 = vld [vmem:[%s294 + $0x20] sm:$0xff]
        %v437 = vld [vmem:[%s294 + $0x28] sm:$0xff]
        %v438 = vld [vmem:[%s294 + $0x30] sm:$0xff]
        %v439 = vld [vmem:[%s294 + $0x38] sm:$0xff]
        %v440 = vld [vmem:[%s294 + $0x40] sm:$0xff]
        %v441 = vld [vmem:[%s294 + $0x48] sm:$0xff]
        %v442 = vld [vmem:[%s294 + $0x50] sm:$0xff]
        %v443 = vld [vmem:[%s294 + $0x58] sm:$0xff]
        %v444 = vld [vmem:[%s294 + $0x60] sm:$0xff]
        %v445 = vld [vmem:[%s294 + $0x68] sm:$0xff]
        %v446 = vld [vmem:[%s294 + $0x70] sm:$0xff]
        %v447 = vld [vmem:[%s294 + $0x78] sm:$0xff]
        %448 = vmatprep.subr.mxu0 0.0
        %449 = vmatpush1.msra.mxu0 %v447
        %450 = vmatprep.subr.mxu0 0.0
        %451 = vmatpush1.msra.mxu0 %v446
        %452 = vmatprep.subr.mxu0 0.0
        %453 = vmatpush1.msra.mxu0 %v445
        %454 = vmatprep.subr.mxu0 0.0
        %455 = vmatpush1.msra.mxu0 %v444
        %456 = vmatprep.subr.mxu0 0.0
        %457 = vmatpush1.msra.mxu0 %v443
        %458 = vmatprep.subr.mxu0 0.0
        %459 = vmatpush1.msra.mxu0 %v442
        %460 = vmatprep.subr.mxu0 0.0
        %461 = vmatpush1.msra.mxu0 %v441
        %462 = vmatprep.subr.mxu0 0.0
        %463 = vmatpush1.msra.mxu0 %v440
        %464 = vmatprep.subr.mxu0 0.0
        %465 = vmatpush1.msra.mxu0 %v439
        %466 = vmatprep.subr.mxu0 0.0
        %467 = vmatpush1.msra.mxu0 %v438
        %468 = vmatprep.subr.mxu0 0.0
        %469 = vmatpush1.msra.mxu0 %v437
        %470 = vmatprep.subr.mxu0 0.0
        %471 = vmatpush1.msra.mxu0 %v436
        %472 = vmatprep.subr.mxu0 0.0
        %473 = vmatpush1.msra.mxu0 %v435
        %474 = vmatprep.subr.mxu0 0.0
        %475 = vmatpush1.msra.mxu0 %v434
        %476 = vmatprep.subr.mxu0 0.0
        %477 = vmatpush1.msra.mxu0 %v433
        %478 = vmatprep.subr.mxu0 0.0
        %479 = vmatpush1.msra.mxu0 %v432
        %480 = vmatprep.subr.mxu0 0.0
        %481 = vmatpush2.msra.mxu0 0.0
        %482 = vmatprep.subr.mxu0 0.0
        %483 = vmatpush2.msra.mxu0 0.0
        %484 = vmatprep.subr.mxu0 0.0
        %485 = vmatpush2.msra.mxu0 0.0
        %486 = vmatprep.subr.mxu0 0.0
        %487 = vmatpush2.msra.mxu0 0.0
        %488 = vmatprep.subr.mxu0 0.0
        %489 = vmatpush2.msra.mxu0 0.0
        %490 = vmatprep.subr.mxu0 0.0
        %491 = vmatpush2.msra.mxu0 0.0
        %492 = vmatprep.subr.mxu0 0.0
        %493 = vmatpush2.msra.mxu0 0.0
        %494 = vmatprep.subr.mxu0 0.0
        %495 = vmatpush2.msra.mxu0 0.0
        %496 = vmatprep.subr.mxu0 0.0
        %497 = vmatpush2.msra.mxu0 0.0
        %498 = vmatprep.subr.mxu0 0.0
        %499 = vmatpush2.msra.mxu0 0.0
        %500 = vmatprep.subr.mxu0 0.0
        %501 = vmatpush2.msra.mxu0 0.0
        %502 = vmatprep.subr.mxu0 0.0
        %503 = vmatpush2.msra.mxu0 0.0
        %504 = vmatprep.subr.mxu0 0.0
        %505 = vmatpush2.msra.mxu0 0.0
        %506 = vmatprep.subr.mxu0 0.0
        %507 = vmatpush2.msra.mxu0 0.0
        %508 = vmatprep.subr.mxu0 0.0
        %509 = vmatpush2.msra.mxu0 0.0
        %510 = vmatprep.subr.mxu0 0.0
        %511 = vmatpush2.msra.mxu0 0.0
        %512 = vmatprep.mubr.f32.mxu0 0.0
        %513 = vmatmul.mubr.f32.gmra.mxu0 %v345
        %v514 = vpop.f32.mrf.mxu0
        %v515 = vadd.f32 0.0, %v514
        %v516 = vpop.f32.mrf.mxu0
        %517 = vdwg.mxu0
        %v518 = vxor.u32 %v429, 2147483648
        %v519 = vmul.f32 %v518, 1.442695
        %v520 = vpow.pop %v519
        %v521 = vadd.f32 %v520, 1.0
        %v522 = vrcp.pop %v521
        %v523 = vmul.f32 1.0, %v522
        %v524 = vmul.f32 %v429, %v523
        %v525 = vmul.f32 %v524, %v515
        %v526 = vld [vmem:[%s303] sm:$0xff]
        %v527 = vld [vmem:[%s303 + $0x8] sm:$0xff]
        %v528 = vld [vmem:[%s303 + $0x10] sm:$0xff]
        %v529 = vld [vmem:[%s303 + $0x18] sm:$0xff]
        %v530 = vld [vmem:[%s303 + $0x20] sm:$0xff]
        %v531 = vld [vmem:[%s303 + $0x28] sm:$0xff]
        %v532 = vld [vmem:[%s303 + $0x30] sm:$0xff]
        %v533 = vld [vmem:[%s303 + $0x38] sm:$0xff]
        %v534 = vld [vmem:[%s303 + $0x40] sm:$0xff]
        %v535 = vld [vmem:[%s303 + $0x48] sm:$0xff]
        %v536 = vld [vmem:[%s303 + $0x50] sm:$0xff]
        %v537 = vld [vmem:[%s303 + $0x58] sm:$0xff]
        %v538 = vld [vmem:[%s303 + $0x60] sm:$0xff]
        %v539 = vld [vmem:[%s303 + $0x68] sm:$0xff]
        %v540 = vld [vmem:[%s303 + $0x70] sm:$0xff]
        %v541 = vld [vmem:[%s303 + $0x78] sm:$0xff]
        %542 = vmatprep.subr.mxu0 0.0
        %543 = vmatpush1.msra.mxu0 %v541
        %544 = vmatprep.subr.mxu0 0.0
        %545 = vmatpush1.msra.mxu0 %v540
        %546 = vmatprep.subr.mxu0 0.0
        %547 = vmatpush1.msra.mxu0 %v539
        %548 = vmatprep.subr.mxu0 0.0
        %549 = vmatpush1.msra.mxu0 %v538
        %550 = vmatprep.subr.mxu0 0.0
        %551 = vmatpush1.msra.mxu0 %v537
        %552 = vmatprep.subr.mxu0 0.0
        %553 = vmatpush1.msra.mxu0 %v536
        %554 = vmatprep.subr.mxu0 0.0
        %555 = vmatpush1.msra.mxu0 %v535
        %556 = vmatprep.subr.mxu0 0.0
        %557 = vmatpush1.msra.mxu0 %v534
        %558 = vmatprep.subr.mxu0 0.0
        %559 = vmatpush1.msra.mxu0 %v533
        %560 = vmatprep.subr.mxu0 0.0
        %561 = vmatpush1.msra.mxu0 %v532
        %562 = vmatprep.subr.mxu0 0.0
        %563 = vmatpush1.msra.mxu0 %v531
        %564 = vmatprep.subr.mxu0 0.0
        %565 = vmatpush1.msra.mxu0 %v530
        %566 = vmatprep.subr.mxu0 0.0
        %567 = vmatpush1.msra.mxu0 %v529
        %568 = vmatprep.subr.mxu0 0.0
        %569 = vmatpush1.msra.mxu0 %v528
        %570 = vmatprep.subr.mxu0 0.0
        %571 = vmatpush1.msra.mxu0 %v527
        %572 = vmatprep.subr.mxu0 0.0
        %573 = vmatpush1.msra.mxu0 %v526
        %574 = vmatprep.subr.mxu0 0.0
        %575 = vmatpush2.msra.mxu0 0.0
        %576 = vmatprep.subr.mxu0 0.0
        %577 = vmatpush2.msra.mxu0 0.0
        %578 = vmatprep.subr.mxu0 0.0
        %579 = vmatpush2.msra.mxu0 0.0
        %580 = vmatprep.subr.mxu0 0.0
        %581 = vmatpush2.msra.mxu0 0.0
        %582 = vmatprep.subr.mxu0 0.0
        %583 = vmatpush2.msra.mxu0 0.0
        %584 = vmatprep.subr.mxu0 0.0
        %585 = vmatpush2.msra.mxu0 0.0
        %586 = vmatprep.subr.mxu0 0.0
        %587 = vmatpush2.msra.mxu0 0.0
        %588 = vmatprep.subr.mxu0 0.0
        %589 = vmatpush2.msra.mxu0 0.0
        %590 = vmatprep.subr.mxu0 0.0
        %591 = vmatpush2.msra.mxu0 0.0
        %592 = vmatprep.subr.mxu0 0.0
        %593 = vmatpush2.msra.mxu0 0.0
        %594 = vmatprep.subr.mxu0 0.0
        %595 = vmatpush2.msra.mxu0 0.0
        %596 = vmatprep.subr.mxu0 0.0
        %597 = vmatpush2.msra.mxu0 0.0
        %598 = vmatprep.subr.mxu0 0.0
        %599 = vmatpush2.msra.mxu0 0.0
        %600 = vmatprep.subr.mxu0 0.0
        %601 = vmatpush2.msra.mxu0 0.0
        %602 = vmatprep.subr.mxu0 0.0
        %603 = vmatpush2.msra.mxu0 0.0
        %604 = vmatprep.subr.mxu0 0.0
        %605 = vmatpush2.msra.mxu0 0.0
        %606 = vmatprep.mubr.f32.mxu0 0.0
        %607 = vmatmul.mubr.f32.gmra.mxu0 %v525
        %v608 = vpop.f32.mrf.mxu0
        %v609 = vadd.f32 0.0, %v608
        %v610 = vpop.f32.mrf.mxu0
        %611 = vdwg.mxu0
        %p612 = scmp.eq.s32.totalorder %s32, 0
        // Predicated region
        $region53: #{tpu_custom_call.1} parent=35 // pred_check
          %p613 = pneg %p612
        $region54: #{tpu_custom_call.1} parent=35 // pred_check_branch
          %615 = sbr.rel (%p613) target = $region56
        $region55: #{tpu_custom_call.1} parent=35 // pred_region
          %616 = vst [vmem:[#allocation2] sm:$0xff] %v609
        $region56: #{tpu_custom_call.1} parent=35 // pred_fallthru
          _
        %p617 = scmp.gt.s32.totalorder %s32, 0
        // Predicated region
        $region57: #{tpu_custom_call.1} parent=35 // pred_check
          %p618 = pneg %p617
        $region58: #{tpu_custom_call.1} parent=35 // pred_check_branch
          %620 = sbr.rel (%p618) target = $region60
        $region59: #{tpu_custom_call.1} parent=35 // pred_region
          %v621 = vld [vmem:[#allocation2] sm:$0xff]
          %v622 = vadd.f32 %v621, %v609
          %623 = vst [vmem:[#allocation2] sm:$0xff] %v622
        $region60: #{tpu_custom_call.1} parent=35 // pred_fallthru
          _
        %p624 = scmp.eq.s32.totalorder %s32, 1
        // Predicated region
        $region61: #{tpu_custom_call.1} parent=35 // pred_check
          %p625 = pneg %p624
        $region62: #{tpu_custom_call.1} parent=35 // pred_check_branch
          %627 = sbr.rel (%p625) target = $region64
        $region63: #{tpu_custom_call.1} parent=35 // pred_region
          %v628 = vld [vmem:[#allocation2] sm:$0xff]
          %629 = vst [vmem:[%s342] sm:$0xff] %v628
        $region64: #{tpu_custom_call.1} parent=35 // pred_fallthru
          _
        %s630 = sand.u32 %s153, 1
        %s631 = scalar_lea.sflag [#allocation5], %s630
        %s632 = sand.u32 %s153, 1
        %s633 = smul.addr %s632, 8
        %s634 = scalar_lea.vmem [#allocation11], %s633
        // Predicated region
        $region65: #{tpu_custom_call.1} parent=35 // pred_check
          %p635 = pneg %p163
        $region66: #{tpu_custom_call.1} parent=35 // pred_check_branch
          %637 = sbr.rel (%p635) target = $region68
        $region67: #{tpu_custom_call.1} parent=35 // pred_region
          %s639 = ssub.s32 128, 128
          %640 = vsyncadd %s631, %s639
          %s641 = smul.addr %s31, 128
          %s642 = scalar_lea.hbm %s4, %s641
          %s644 = sshll.u32 %s634, 4
          %s645 = int_to_ptr.vmem [resolvable:$true] %s644
          %647 = dma.vmem_to_hbm [thread:$0]  %s645, 128, %s642, %s631
        $region68: #{tpu_custom_call.1} parent=35 // pred_fallthru
          _
      $region36: #{tpu_custom_call.1} parent=5 // pred_fallthru
        _
      %p648 = scmp.le.s32.totalorder 2, %s22
      // Predicated region
      $region69: #{tpu_custom_call.1} parent=5 // pred_check
        %p649 = pneg %p648
      $region70: #{tpu_custom_call.1} parent=5 // pred_check_branch
        %651 = sbr.rel (%p649) target = $region72
      $region71: #{tpu_custom_call.1} parent=5 // pred_region
        %s652 = ssub.s32 %s22, 2
        // Predicated region
        $region73: #{tpu_custom_call.1} parent=71 // pred_check
          %p653 = pneg %p169
        $region74: #{tpu_custom_call.1} parent=71 // pred_check_branch
          %655 = sbr.rel (%p653) target = $region76
        $region75: #{tpu_custom_call.1} parent=71 // pred_region
          %s656 = sand.u32 %s154, 1
          %s657 = scalar_lea.sflag [#allocation5], %s656
          %s658 = sand.u32 %s154, 1
          %s659 = smul.addr %s658, 8
          %s660 = scalar_lea.vmem [#allocation11], %s659
          %661 = dma.done %s657, 128
        $region76: #{tpu_custom_call.1} parent=71 // pred_fallthru
          _
      $region72: #{tpu_custom_call.1} parent=5 // pred_fallthru
        _
    $region6: #{tpu_custom_call.1} parent=1 // loop_footer
      %s26 = sadd.s32 1, %s22
    $region7: #{tpu_custom_call.1} parent=1 // loop_footer_branch
      %21 = sbr.rel target = $region3
    $region8: #{tpu_custom_call.1} parent=1 // loop_exit
      _
    %662 = vsyncpa [#allocation4], 1
    %s663 = scalar_lea.sflag [#allocation4], 1
    %664 = vsyncpa %s663, 1
    %665 = vsyncpa [#allocation7], 1
    %s666 = scalar_lea.sflag [#allocation7], 1
    %667 = vsyncpa %s666, 1
    %668 = vsyncpa [#allocation10], 1
    %s669 = scalar_lea.sflag [#allocation10], 1
    %670 = vsyncpa %s669, 1
    %671 = vsyncpa [#allocation5], 1
    %s672 = scalar_lea.sflag [#allocation5], 1
    %673 = vsyncpa %s672, 1

</llo_original>
